<compile_context>
chip_gen: v7x
topology: tpu7x:2x2x1
jax: 0.10.0
libtpu: 0.0.40
codegen_flags: <defaults>
</compile_context>

<pallas_src>
import jax
import jax.numpy as jnp
from jax import lax
from jax.experimental import pallas as pl
from jax.experimental.pallas import tpu as pltpu

IN_FEATURES = 24 * 6   # 144
HIDDEN = 64
OUT = 1
# The 64->1 weight row is zero-padded to 16 rows (bf16 sublane quantum) so the
# second-layer matmul has a well-aligned M dimension; row 0 is the real output.
W2_ROWS = 16


def _mlp_kernel(x_ref, w1_ref, b1_ref, w2_ref, b2_ref, o_ref):
    # x: (TB, 144) f32 | w1: (144, 64) bf16 | b1: (1, 64) f32
    # w2: (16, 64) bf16 (row 0 real, rest zero) | b2: (1, 1) f32 | o: (1, TB) f32
    x = x_ref[...].astype(jnp.bfloat16)                        # VPU cast (free under mem slack)
    # Layer 1 on the MXU with f32 accumulation, bias + ReLU on the VPU.
    h = jnp.dot(x, w1_ref[...], preferred_element_type=jnp.float32)   # (TB, 64)
    h = jnp.maximum(h + b1_ref[...], 0.0)
    # Layer 2 (64 -> 1): contract the hidden axis of h against the w2 rows
    # (same contraction pattern as q.k^T in flash attention) so the per-row
    # result lands on the lane axis -> lane-dense (1, TB) output block.
    y = lax.dot_general(w2_ref[...], h.astype(jnp.bfloat16),
                        (((1,), (1,)), ((), ())),
                        preferred_element_type=jnp.float32)            # (16, TB)
    o_ref[...] = (y[0:1, :] + b2_ref[...]).astype(o_ref.dtype)         # (1, TB)


def _round_up(n, m):
    return ((n + m - 1) // m) * m


def mlp_regressor_forward(x, w1, b1, w2, b2, *, tb=8192):
    """x: any shape whose total size is a multiple of 144 (matches x.view(-1, 144))."""
    x2d = jnp.reshape(x, (-1, IN_FEATURES)).astype(jnp.float32)  # no-op for f32 inputs
    B = x2d.shape[0]

    # Weights are tiny: reshape/cast/pad them once in the wrapper (negligible).
    w1 = jnp.reshape(w1, (IN_FEATURES, HIDDEN)).astype(jnp.bfloat16)
    b1 = jnp.reshape(b1, (1, HIDDEN)).astype(jnp.float32)
    w2_row = jnp.reshape(w2, (1, HIDDEN)).astype(jnp.bfloat16)
    w2p = jnp.concatenate(
        [w2_row, jnp.zeros((W2_ROWS - 1, HIDDEN), jnp.bfloat16)], axis=0)
    b2 = jnp.reshape(b2, (1, 1)).astype(jnp.float32)

    # Batch tiling. No wrapper pad: the trailing partial block is masked by
    # Pallas. Keep tiles a multiple of 128 rows (lane-dense output blocks), and
    # guarantee >= 2 grid steps whenever B > 128 so the "parallel" axis can be
    # sharded across both v7x TensorCores.
    tb = _round_up(max(int(tb), 128), 128)
    if B <= 128:
        tb_eff = B                                          # single full-array block
    elif B <= tb:
        tb_eff = _round_up(pl.cdiv(B, 2), 128)              # at least 2 tiles
    else:
        tb_eff = _round_up(pl.cdiv(B, pl.cdiv(B, tb)), 128)  # balanced tiles <= tb
    num_tiles = pl.cdiv(B, tb_eff)

    weight_bytes = IN_FEATURES * HIDDEN * 2 + HIDDEN * 4 + W2_ROWS * HIDDEN * 2 + 4
    cost = pl.CostEstimate(
        flops=2 * B * IN_FEATURES * HIDDEN + 2 * B * HIDDEN * W2_ROWS + 3 * B * HIDDEN,
        transcendentals=0,
        bytes_accessed=B * IN_FEATURES * 4 + B * OUT * 4 + weight_bytes,
    )

    out = pl.pallas_call(
        _mlp_kernel,
        out_shape=jax.ShapeDtypeStruct((1, B), jnp.float32),
        grid_spec=pltpu.PrefetchScalarGridSpec(
            num_scalar_prefetch=0,
            grid=(num_tiles,),
            in_specs=[
                # x: tiled along the batch; auto double-buffered by the pipeline.
                pl.BlockSpec((tb_eff, IN_FEATURES), lambda i: (i, 0)),
                # Weights/biases: constant block index -> fetched once, VMEM resident.
                pl.BlockSpec((IN_FEATURES, HIDDEN), lambda i: (0, 0)),
                pl.BlockSpec((1, HIDDEN), lambda i: (0, 0)),
                pl.BlockSpec((W2_ROWS, HIDDEN), lambda i: (0, 0)),
                pl.BlockSpec((1, 1), lambda i: (0, 0)),
            ],
            # Lane-dense output: (1, TB) blocks over a (1, B) result row.
            out_specs=pl.BlockSpec((1, tb_eff), lambda i: (0, i)),
        ),
        compiler_params=pltpu.CompilerParams(
            # Independent batch tiles: shard across both TCs on v7x; harmless elsewhere.
            dimension_semantics=("parallel",),
            # Fits v5e/v6e/v7x scoped budgets; TB=8192 uses ~16 MiB total.
            vmem_limit_bytes=32 * 1024 * 1024,
        ),
        cost_estimate=cost,
    )(x2d, w1, b1, w2p, b2)

    return jnp.reshape(out, (B, OUT))


def init_params(key):
    """Deterministic init mimicking torch.nn.Linear (uniform +/- 1/sqrt(fan_in))."""
    k1, k2, k3, k4 = jax.random.split(key, 4)
    lim1 = 1.0 / jnp.sqrt(jnp.float32(IN_FEATURES))
    lim2 = 1.0 / jnp.sqrt(jnp.float32(HIDDEN))
    # hidden layer stored transposed: (in, out); output layer in torch layout (1, 64).
    w1 = jax.random.uniform(k1, (IN_FEATURES, HIDDEN), jnp.float32, -lim1, lim1)
    b1 = jax.random.uniform(k2, (HIDDEN,), jnp.float32, -lim1, lim1)
    w2 = jax.random.uniform(k3, (OUT, HIDDEN), jnp.float32, -lim2, lim2)
    b2 = jax.random.uniform(k4, (OUT,), jnp.float32, -lim2, lim2)
    return w1, b1, w2, b2


def reference_forward(x, w1, b1, w2, b2):
    """Pure-JAX reference mirroring the kernel's bf16 inputs / f32 accumulation."""
    x2d = jnp.reshape(x, (-1, IN_FEATURES)).astype(jnp.float32).astype(jnp.bfloat16)
    w1b = jnp.reshape(w1, (IN_FEATURES, HIDDEN)).astype(jnp.bfloat16)
    h = jnp.dot(x2d, w1b, preferred_element_type=jnp.float32)
    h = jnp.maximum(h + jnp.reshape(b1, (1, HIDDEN)), 0.0)
    w2b = jnp.reshape(w2, (OUT, HIDDEN)).astype(jnp.bfloat16)
    y = jnp.dot(h.astype(jnp.bfloat16), w2b.T, preferred_element_type=jnp.float32)
    return y + jnp.reshape(b2, (1, OUT))


if __name__ == "__main__":
    key = jax.random.PRNGKey(0)
    kx, kp = jax.random.split(key)
    w1, b1, w2, b2 = init_params(kp)

    # Small batch: 8 samples of (24, 6), flattened inside forward to (8, 144).
    # Exercises the single full-array-block path.
    x = jax.random.normal(kx, (8, 24, 6), dtype=jnp.float32)
    out = jax.block_until_ready(mlp_regressor_forward(x, w1, b1, w2, b2))
    ref = reference_forward(x, w1, b1, w2, b2)
    assert out.shape == (8, 1), out.shape
    assert jnp.allclose(out, ref, atol=1e-3, rtol=1e-3), "mismatch (small batch)"

    # Medium batch, default tb: forced >= 2 tiles (v7x megacore) + masked ragged tail.
    x_med = jax.random.normal(kx, (300, 24, 6), dtype=jnp.float32)
    out_med = jax.block_until_ready(mlp_regressor_forward(x_med, w1, b1, w2, b2))
    ref_med = reference_forward(x_med, w1, b1, w2, b2)
    assert out_med.shape == (300, 1), out_med.shape
    assert jnp.allclose(out_med, ref_med, atol=1e-3, rtol=1e-3), "mismatch (2-tile batch)"

    # Multi-tile path with small tiles: 3 tiles of 128 rows, ragged last tile.
    out_t = jax.block_until_ready(mlp_regressor_forward(x_med, w1, b1, w2, b2, tb=128))
    assert out_t.shape == (300, 1), out_t.shape
    assert jnp.allclose(out_t, ref_med, atol=1e-3, rtol=1e-3), "mismatch (3-tile batch)"

    print("KERNEL_OK")
</pallas_src>

<mosaic_0001>
module attributes {stable_mosaic.version = 11 : i64} {
  func.func @_mlp_kernel(%arg0: i32, %arg1: memref<8x144xf32, #tpu.memory_space<vmem>>, %arg2: memref<144x64xbf16, #tpu.memory_space<vmem>>, %arg3: memref<1x64xf32, #tpu.memory_space<vmem>>, %arg4: memref<16x64xbf16, #tpu.memory_space<vmem>>, %arg5: memref<1x1xf32, #tpu.memory_space<vmem>>, %arg6: memref<1x8xf32, #tpu.memory_space<vmem>>) attributes {dimension_semantics = [#tpu.dimension_semantics<parallel>], iteration_bounds = array<i64: 1>, scalar_prefetch = 0 : i64, scratch_operands = 0 : i64, tpu.core_type = #tpu.core_type<tc>, window_params = [{transform_indices = @transform_0, window_bounds = array<i64: 8, 144>}, {pipeline_mode = #tpu.pipeline_mode<synchronous>, transform_indices = @transform_1, window_bounds = array<i64: 144, 64>}, {pipeline_mode = #tpu.pipeline_mode<synchronous>, transform_indices = @transform_2, window_bounds = array<i64: 1, 64>}, {pipeline_mode = #tpu.pipeline_mode<synchronous>, transform_indices = @transform_3, window_bounds = array<i64: 16, 64>}, {pipeline_mode = #tpu.pipeline_mode<synchronous>, transform_indices = @transform_4, window_bounds = array<i64: 1, 1>}, {transform_indices = @transform_5, window_bounds = array<i64: 1, 8>}]} {
    %c0 = arith.constant 0 : index
    %c0_0 = arith.constant 0 : index
    %0 = vector.load %arg1[%c0, %c0_0] : memref<8x144xf32, #tpu.memory_space<vmem>>, vector<8x144xf32>
    %1 = arith.truncf %0 : vector<8x144xf32> to vector<8x144xbf16>
    %c0_1 = arith.constant 0 : index
    %c0_2 = arith.constant 0 : index
    %2 = vector.load %arg2[%c0_1, %c0_2] : memref<144x64xbf16, #tpu.memory_space<vmem>>, vector<144x64xbf16>
    %cst = arith.constant dense<0.000000e+00> : vector<8x64xf32>
    %3 = tpu.matmul %1, %2, %cst {dimension_numbers = #tpu.dot_dimension_numbers<[1], [0], [0], [1], [0, 0, 1, 1], [], []>} : vector<8x144xbf16>, vector<144x64xbf16>, vector<8x64xf32> -> vector<8x64xf32>
    %c0_3 = arith.constant 0 : index
    %c0_4 = arith.constant 0 : index
    %4 = vector.load %arg3[%c0_3, %c0_4] : memref<1x64xf32, #tpu.memory_space<vmem>>, vector<1x64xf32>
    %5 = vector.broadcast %4 : vector<1x64xf32> to vector<8x64xf32>
    %6 = arith.addf %3, %5 : vector<8x64xf32>
    %cst_5 = arith.constant 0.000000e+00 : f32
    %7 = vector.broadcast %cst_5 : f32 to vector<8x64xf32>
    %8 = arith.maximumf %6, %7 : vector<8x64xf32>
    %c0_6 = arith.constant 0 : index
    %c0_7 = arith.constant 0 : index
    %9 = vector.load %arg4[%c0_6, %c0_7] : memref<16x64xbf16, #tpu.memory_space<vmem>>, vector<16x64xbf16>
    %10 = arith.truncf %8 : vector<8x64xf32> to vector<8x64xbf16>
    %cst_8 = arith.constant dense<0.000000e+00> : vector<16x8xf32>
    %11 = tpu.matmul %9, %10, %cst_8 {dimension_numbers = #tpu.dot_dimension_numbers<[1], [1], [0], [0], [0, 0, 1, 0], [], []>} : vector<16x64xbf16>, vector<8x64xbf16>, vector<16x8xf32> -> vector<16x8xf32>
    %12 = vector.extract_strided_slice %11 {offsets = [0, 0], sizes = [1, 8], strides = [1, 1]} : vector<16x8xf32> to vector<1x8xf32>
    %c0_9 = arith.constant 0 : index
    %c0_10 = arith.constant 0 : index
    %13 = vector.load %arg5[%c0_9, %c0_10] : memref<1x1xf32, #tpu.memory_space<vmem>>, vector<1x1xf32>
    %14 = vector.broadcast %13 : vector<1x1xf32> to vector<1x8xf32>
    %15 = arith.addf %12, %14 : vector<1x8xf32>
    %c0_11 = arith.constant 0 : index
    %c0_12 = arith.constant 0 : index
    %16 = vector.load %arg6[%c0_11, %c0_12] : memref<1x8xf32, #tpu.memory_space<vmem>>, vector<1x8xf32>
    tpu.vector_store %arg6[%c0_11, %c0_12], %15 {strides = array<i32>} : memref<1x8xf32, #tpu.memory_space<vmem>>, vector<1x8xf32>,
    return
  }
  func.func @transform_0(%arg0: i32) -> (i32, i32) {
    %c0_i32 = arith.constant 0 : i32
    %c0_i32_0 = arith.constant 0 : i32
    return %arg0, %c0_i32 : i32, i32
  }
  func.func @transform_1(%arg0: i32) -> (i32, i32) {
    %c0_i32 = arith.constant 0 : i32
    %c0_i32_0 = arith.constant 0 : i32
    %c0_i32_1 = arith.constant 0 : i32
    return %c0_i32, %c0_i32_0 : i32, i32
  }
  func.func @transform_2(%arg0: i32) -> (i32, i32) {
    %c0_i32 = arith.constant 0 : i32
    %c0_i32_0 = arith.constant 0 : i32
    %c0_i32_1 = arith.constant 0 : i32
    return %c0_i32, %c0_i32_0 : i32, i32
  }
  func.func @transform_3(%arg0: i32) -> (i32, i32) {
    %c0_i32 = arith.constant 0 : i32
    %c0_i32_0 = arith.constant 0 : i32
    %c0_i32_1 = arith.constant 0 : i32
    return %c0_i32, %c0_i32_0 : i32, i32
  }
  func.func @transform_4(%arg0: i32) -> (i32, i32) {
    %c0_i32 = arith.constant 0 : i32
    %c0_i32_0 = arith.constant 0 : i32
    %c0_i32_1 = arith.constant 0 : i32
    return %c0_i32, %c0_i32_0 : i32, i32
  }
  func.func @transform_5(%arg0: i32) -> (i32, i32) {
    %c0_i32 = arith.constant 0 : i32
    %c0_i32_0 = arith.constant 0 : i32
    return %c0_i32, %arg0 : i32, i32
  }
}

</mosaic_0001>

<llo_original>
// kernel: tpu_custom_call.1
$region0: #{tpu_custom_call.1}
  #allocation0 [shape = 'u32[]', space=smem, size = 0x4, offset = 0x4, fixed_abs, tag = 'smem constant byte address 0x4 - core index']
  #allocation1 [shape = 'u32[144,128]{1,0:T(1,128)}', space=vmem, size = 0x12000, scoped, tag = 'internal scratch']
  #allocation2 [shape = 'f32[1,1]{1,0:T(1,128)S(1)}', space=vmem, size = 0x200, scoped, tag = 'scoped memory for tpu_custom_call.1']
  %s0 = inlined_call_operand.vmem [shape: f32[8,144], index: 0, kind: input, shape index: {}]
  %s1 = inlined_call_operand.vmem [shape: bf16[144,64], index: 1, kind: input, shape index: {}]
  %s2 = inlined_call_operand.vmem [shape: f32[1,64], index: 2, kind: input, shape index: {}]
  %s3 = inlined_call_operand.vmem [shape: bf16[16,64], index: 3, kind: input, shape index: {}]
  %s4 = inlined_call_operand.<no memory space> [shape: f32[1,1], index: 4, kind: input, shape index: {}]
  %s5 = inlined_call_operand.hbm [shape: f32[1,8], index: 5, kind: output, shape index: {}]
  %s6 = sld [smem:[#allocation0]]
  $region30: #{tpu_custom_call.1} parent=0
    _
  %s8 = ssub.s32 1, %s6
  %s9 = scalar_select 0, %s8, %s6
  %v10 = vstv %s4
  %11 = vst [vmem:[#allocation2] sm:$0x1] %v10
  $region1: #{tpu_custom_call.1} parent=0
    #allocation3 [shape = 'u8[512]{0}', space=vmem, size = 0x400, scoped, tag = 'output window, operand 0, single buffered']
    #allocation4 [shape = 's32[1]{0}', space=sflag, size = 0x4, scoped, tag = 'scoped memory for tpu_custom_call.1']
    %12 = vsyncpa [#allocation4], 0
    // Predicated region
    $region2: #{tpu_custom_call.1} parent=1 // pred_check
      _
    $region3: #{tpu_custom_call.1} parent=1 // pred_check_branch
      %14 = sbr.rel (0) target = $region5
    $region4: #{tpu_custom_call.1} parent=1 // pred_region
      _
    $region5: #{tpu_custom_call.1} parent=1 // pred_fallthru
      _
    // Predicated region
    $region6: #{tpu_custom_call.1} parent=1 // pred_check
      _
    $region7: #{tpu_custom_call.1} parent=1 // pred_check_branch
      %16 = sbr.rel (0) target = $region9
    $region8: #{tpu_custom_call.1} parent=1 // pred_region
      _
    $region9: #{tpu_custom_call.1} parent=1 // pred_fallthru
      _
    // Predicated region
    $region10: #{tpu_custom_call.1} parent=1 // pred_check
      _
    $region11: #{tpu_custom_call.1} parent=1 // pred_check_branch
      %18 = sbr.rel (0) target = $region13
    $region12: #{tpu_custom_call.1} parent=1 // pred_region
      _
    $region13: #{tpu_custom_call.1} parent=1 // pred_fallthru
      _
    // Predicated region
    $region14: #{tpu_custom_call.1} parent=1 // pred_check
      _
    $region15: #{tpu_custom_call.1} parent=1 // pred_check_branch
      %20 = sbr.rel (0) target = $region17
    $region16: #{tpu_custom_call.1} parent=1 // pred_region
      _
    $region17: #{tpu_custom_call.1} parent=1 // pred_fallthru
      _
    // Predicated region
    $region18: #{tpu_custom_call.1} parent=1 // pred_check
      _
    $region19: #{tpu_custom_call.1} parent=1 // pred_check_branch
      %22 = sbr.rel (0) target = $region21
    $region20: #{tpu_custom_call.1} parent=1 // pred_region
      _
    $region21: #{tpu_custom_call.1} parent=1 // pred_fallthru
      _
    %v24 = vld [vmem:[%s0] sm:$0xff]
    %v25 = vld [vmem:[%s0 + $0x8] sm:$0xff]
    %v26 = vpack.c.bf16 %v24, %v24
    %v27 = vpack.c.bf16 %v25, %v25
    %v28 = vld [vmem:[%s1] sm:$0xf]
    %v29 = vld [vmem:[%s1 + $0x4] sm:$0xf]
    %v30 = vld [vmem:[%s1 + $0x8] sm:$0xf]
    %v31 = vld [vmem:[%s1 + $0xc] sm:$0xf]
    %v32 = vld [vmem:[%s1 + $0x10] sm:$0xf]
    %v33 = vld [vmem:[%s1 + $0x14] sm:$0xf]
    %v34 = vld [vmem:[%s1 + $0x18] sm:$0xf]
    %v35 = vld [vmem:[%s1 + $0x1c] sm:$0xf]
    %v36 = vld [vmem:[%s1 + $0x20] sm:$0xf]
    %v37 = vld [vmem:[%s1 + $0x24] sm:$0xf]
    %v38 = vld [vmem:[%s1 + $0x28] sm:$0xf]
    %v39 = vld [vmem:[%s1 + $0x2c] sm:$0xf]
    %v40 = vld [vmem:[%s1 + $0x30] sm:$0xf]
    %v41 = vld [vmem:[%s1 + $0x34] sm:$0xf]
    %v42 = vld [vmem:[%s1 + $0x38] sm:$0xf]
    %v43 = vld [vmem:[%s1 + $0x3c] sm:$0xf]
    %v44 = vld [vmem:[%s1 + $0x40] sm:$0xf]
    %v45 = vld [vmem:[%s1 + $0x44] sm:$0xf]
    %v46 = vld [vmem:[%s2] sm:$0x1]
    %v48 = vlaneseq
    %v49 = vshrl.u32 %v48, 7
    %v50 = vsub.s32 0, %v49
    %v51 = vrot.slane %v46, %v50
    %v71 = vunpack.c.l.b16 %v28
    %v72 = vunpack.c.l.b16 %v29
    %v73 = vunpack.c.l.b16 %v30
    %v74 = vunpack.c.l.b16 %v31
    %v75 = vunpack.c.l.b16 %v32
    %v76 = vunpack.c.l.b16 %v33
    %v77 = vunpack.c.l.b16 %v34
    %v78 = vunpack.c.l.b16 %v35
    %v79 = vunpack.c.l.b16 %v36
    %v80 = vunpack.c.l.b16 %v37
    %v81 = vunpack.c.l.b16 %v38
    %v82 = vunpack.c.l.b16 %v39
    %v83 = vunpack.c.l.b16 %v40
    %v84 = vunpack.c.l.b16 %v41
    %v85 = vunpack.c.l.b16 %v42
    %v86 = vunpack.c.l.b16 %v43
    %v87 = vunpack.c.l.b16 %v44
    %v88 = vunpack.c.l.b16 %v45
    %v89 = vpack.c.b16 %v72, %v71
    %v90 = vpack.c.b16 %v74, %v73
    %v91 = vpack.c.b16 %v76, %v75
    %v92 = vpack.c.b16 %v78, %v77
    %v93 = vpack.c.b16 %v80, %v79
    %v94 = vpack.c.b16 %v82, %v81
    %v95 = vpack.c.b16 %v84, %v83
    %v96 = vpack.c.b16 %v86, %v85
    %v97 = vpack.c.b16 %v88, %v87
    %vm107 = vcmask 130048
    %v109 = vsel %vm107, %v27, 0
    %111 = vmatprep.subr.bf16.mxu0 0
    %112 = vmatpush1.bf16.msra.mxu0 %v89
    %113 = vmatprep.subr.bf16.mxu0 0
    %114 = vmatpush1.bf16.msra.mxu0 %v90
    %115 = vmatprep.subr.bf16.mxu0 0
    %116 = vmatpush1.bf16.msra.mxu0 %v91
    %117 = vmatprep.subr.bf16.mxu0 0
    %118 = vmatpush1.bf16.msra.mxu0 %v92
    %119 = vmatprep.subr.bf16.mxu0 0
    %120 = vmatpush1.bf16.msra.mxu0 %v93
    %121 = vmatprep.subr.bf16.mxu0 0
    %122 = vmatpush1.bf16.msra.mxu0 %v94
    %123 = vmatprep.subr.bf16.mxu0 0
    %124 = vmatpush1.bf16.msra.mxu0 %v95
    %125 = vmatprep.subr.bf16.mxu0 0
    %126 = vmatpush1.bf16.msra.mxu0 %v96
    %127 = vmatprep.subr.bf16.mxu0 0
    %128 = vmatpush1.bf16.msra.mxu0 %v97
    %129 = vmatprep.subr.bf16.mxu0 0
    %130 = vmatpush1.bf16.msra.mxu0 0
    %131 = vmatprep.subr.bf16.mxu0 0
    %132 = vmatpush1.bf16.msra.mxu0 0
    %133 = vmatprep.subr.bf16.mxu0 0
    %134 = vmatpush1.bf16.msra.mxu0 0
    %135 = vmatprep.subr.bf16.mxu0 0
    %136 = vmatpush1.bf16.msra.mxu0 0
    %137 = vmatprep.subr.bf16.mxu0 0
    %138 = vmatpush1.bf16.msra.mxu0 0
    %139 = vmatprep.subr.bf16.mxu0 0
    %140 = vmatpush1.bf16.msra.mxu0 0
    %141 = vmatprep.subr.bf16.mxu0 0
    %142 = vmatpush1.bf16.msra.mxu0 0
    %143 = vmatprep.mubr.bf16.mxu0 %v109
    %144 = vmatmul.mubr.bf16.gmra.mrb[0].mxu0 %v26
    %v145 = vpop.f32.mrb[0].mxu0
    %v146 = vadd.f32 %v51, %v145
    %v147 = vpop.f32.mrb[0].mxu0
    %v148 = vpop.f32.mrb[0].mxu0
    %v149 = vpop.f32.mrb[0].mxu0
    %150 = vdwg.mxu0
    %v151 = vmax.f32 %v146, 0.0
    %v152 = vld [vmem:[%s3] sm:$0xf]
    %v153 = vld [vmem:[%s3 + $0x4] sm:$0xf]
    %v154 = vpack.c.bf16 %v151, %v151
    %v157 = vunpack.c.l.b16 %v152
    %v158 = vunpack.c.l.b16 %v153
    %v159 = vpack.c.b16 %v158, %v157
    %vm160 = vcmask 523264
    %v162 = vsel %vm160, %v159, 0
    %v165 = vsel %vm160, %v154, 0
    %167 = vmatprep.subr.bf16.mxu0 0
    %168 = vmatpush1.bf16.xpose.msra.mxu0 %v165
    %169 = vmatprep.subr.bf16.mxu0 0
    %170 = vmatpush1.bf16.xpose.msra.mxu0 0
    %171 = vmatprep.subr.bf16.mxu0 0
    %172 = vmatpush1.bf16.xpose.msra.mxu0 0
    %173 = vmatprep.subr.bf16.mxu0 0
    %174 = vmatpush1.bf16.xpose.msra.mxu0 0
    %175 = vmatprep.subr.bf16.mxu0 0
    %176 = vmatpush1.bf16.xpose.msra.mxu0 0
    %177 = vmatprep.subr.bf16.mxu0 0
    %178 = vmatpush1.bf16.xpose.msra.mxu0 0
    %179 = vmatprep.subr.bf16.mxu0 0
    %180 = vmatpush1.bf16.xpose.msra.mxu0 0
    %181 = vmatprep.subr.bf16.mxu0 0
    %182 = vmatpush1.bf16.xpose.msra.mxu0 0
    %183 = vmatprep.subr.bf16.mxu0 0
    %184 = vmatpush1.bf16.xpose.msra.mxu0 0
    %185 = vmatprep.subr.bf16.mxu0 0
    %186 = vmatpush1.bf16.xpose.msra.mxu0 0
    %187 = vmatprep.subr.bf16.mxu0 0
    %188 = vmatpush1.bf16.xpose.msra.mxu0 0
    %189 = vmatprep.subr.bf16.mxu0 0
    %190 = vmatpush1.bf16.xpose.msra.mxu0 0
    %191 = vmatprep.subr.bf16.mxu0 0
    %192 = vmatpush1.bf16.xpose.msra.mxu0 0
    %193 = vmatprep.subr.bf16.mxu0 0
    %194 = vmatpush1.bf16.xpose.msra.mxu0 0
    %195 = vmatprep.subr.bf16.mxu0 0
    %196 = vmatpush1.bf16.xpose.msra.mxu0 0
    %197 = vmatprep.subr.bf16.mxu0 0
    %198 = vmatpush1.bf16.xpose.msra.mxu0 0
    %199 = vmatprep.mubr.bf16.mxu0 0
    %200 = vmatmul.mubr.bf16.gmra.mrb[0].mxu0 %v162
    %v201 = vpop.f32.mrb[0].mxu0
    %v202 = vadd.f32 0.0, %v201
    %v203 = vpop.f32.mrb[0].mxu0
    %v204 = vpop.f32.mrb[0].mxu0
    %v205 = vpop.f32.mrb[0].mxu0
    %206 = vdwg.mxu0
    %v207 = vld [vmem:[#allocation2] sm:$0x1]
    %209 = vset.pattern.permute.xlu0 0
    %210 = vperm.xlu0 %209, %v207
    %v211 = vpop.permute.xlu0 %210
    %v213 = vlaneseq
    %v214 = vshrl.u32 %v213, 7
    %v215 = vsub.s32 0, %v214
    %v216 = vrot.slane %v211, %v215
    %v217 = vadd.f32 %v202, %v216
    %vm218 = vcmask 57344
    %219 = vst.msk [vmem:[#allocation3] sm:$0x1] %vm218, %v217
    // Predicated region
    $region22: #{tpu_custom_call.1} parent=1 // pred_check
      _
    $region23: #{tpu_custom_call.1} parent=1 // pred_check_branch
      %221 = sbr.rel (0) target = $region25
    $region24: #{tpu_custom_call.1} parent=1 // pred_region
      %s223 = ssub.s32 16, 16
      %224 = vsyncadd [#allocation4], %s223
      %s226 = sshll.u32 [#allocation3], 4
      %s227 = int_to_ptr.vmem [resolvable:$true] %s226
      %229 = dma.vmem_to_hbm [thread:$0]  %s227, 16, %s5, [#allocation4]
    $region25: #{tpu_custom_call.1} parent=1 // pred_fallthru
      _
    // Predicated region
    $region26: #{tpu_custom_call.1} parent=1 // pred_check
      _
    $region27: #{tpu_custom_call.1} parent=1 // pred_check_branch
      %231 = sbr.rel (0) target = $region29
    $region28: #{tpu_custom_call.1} parent=1 // pred_region
      %232 = dma.done [#allocation4], 16
    $region29: #{tpu_custom_call.1} parent=1 // pred_fallthru
      _
    %233 = vsyncpa [#allocation4], 1

</llo_original>
